<compile_context>
chip_gen: v5e
topology: v5e:2x2
jax: 0.10.0
libtpu: 0.0.40
codegen_flags: <defaults>
</compile_context>

<pallas_src>
import functools

import jax
import jax.numpy as jnp
from jax.experimental import pallas as pl
from jax.experimental.pallas import tpu as pltpu


def _round_up(v, m):
    return ((v + m - 1) // m) * m


_LANE = 128
_VMEM_LIMIT_BYTES = 32 * 1024 * 1024   # safe scoped-VMEM request on v5e/v6e/v7x
_VMEM_TILE_BUDGET = 20 * 1024 * 1024   # double-buffered per-step working-set target
_SMALL_LIMIT_BYTES = 8 * 1024 * 1024   # whole (padded) problem resident in VMEM


# ----------------------------- small (single-step) path -----------------------------

def _ensemble_linear_small_kernel(x_ref, w_ref, b_ref, o_ref, *, compute_dtype):
    # x: (E, B, K), w: (E, K, N), b: (E, 1, N), o: (E, B, N) -- all fully in VMEM.
    xv = x_ref[...]
    wv = w_ref[...]
    if compute_dtype is not None:
        xv = xv.astype(compute_dtype)
        wv = wv.astype(compute_dtype)
    acc = jnp.einsum("ebk,ekn->ebn", xv, wv, preferred_element_type=jnp.float32)
    o_ref[...] = (acc + b_ref[...].astype(jnp.float32)).astype(o_ref.dtype)


def _ensemble_linear_small(x, weight, bias, compute_dtype):
    E, B, K = x.shape
    N = weight.shape[2]

    # Lane-dense output: pad the feature dim to a multiple of 128 so stores are
    # full-width; the pad columns are sliced off in the wrapper (tiny problem,
    # so the slice is cheap).
    Np = _round_up(N, _LANE)
    if Np != N:
        weight = jnp.pad(weight, ((0, 0), (0, 0), (0, Np - N)))
        bias = jnp.pad(bias, ((0, 0), (0, 0), (0, Np - N)))

    out_bytes = E * B * Np * x.dtype.itemsize
    cost = pl.CostEstimate(
        flops=2 * E * B * K * Np,
        transcendentals=0,
        bytes_accessed=x.nbytes + weight.nbytes + bias.nbytes + out_bytes,
    )
    out = pl.pallas_call(
        functools.partial(_ensemble_linear_small_kernel, compute_dtype=compute_dtype),
        out_shape=jax.ShapeDtypeStruct((E, B, Np), x.dtype),
        in_specs=[
            pl.BlockSpec(memory_space=pltpu.MemorySpace.VMEM),
            pl.BlockSpec(memory_space=pltpu.MemorySpace.VMEM),
            pl.BlockSpec(memory_space=pltpu.MemorySpace.VMEM),
        ],
        out_specs=pl.BlockSpec(memory_space=pltpu.MemorySpace.VMEM),
        compiler_params=pltpu.CompilerParams(vmem_limit_bytes=_VMEM_LIMIT_BYTES),
        cost_estimate=cost,
    )(x, weight, bias)
    return out[..., :N] if Np != N else out


# --------------------------------- tiled kernels ---------------------------------

def _ensemble_linear_onek_kernel(x_ref, w_ref, b_ref, o_ref, *, compute_dtype):
    # x: (tm, K), w: (K, tn), b: (1, tn), o: (tm, tn). Single K tile: no scratch,
    # no predicated init/finalize -- one dot, add bias, store.
    xv = x_ref[...]
    wv = w_ref[...]
    if compute_dtype is not None:
        xv = xv.astype(compute_dtype)
        wv = wv.astype(compute_dtype)
    acc = jnp.dot(xv, wv, preferred_element_type=jnp.float32)
    o_ref[...] = (acc + b_ref[...].astype(jnp.float32)).astype(o_ref.dtype)


def _ensemble_linear_kacc_kernel(x_ref, w_ref, b_ref, o_ref, acc_ref, *, compute_dtype):
    # x: (tm, tk), w: (tk, tn), b: (1, tn), o: (tm, tn), acc: (tm, tn) f32.
    k = pl.program_id(3)

    @pl.when(k == 0)
    def _init():
        acc_ref[...] = jnp.zeros_like(acc_ref)

    xv = x_ref[...]
    wv = w_ref[...]
    if compute_dtype is not None:
        xv = xv.astype(compute_dtype)
        wv = wv.astype(compute_dtype)
    acc_ref[...] += jnp.dot(xv, wv, preferred_element_type=jnp.float32)

    @pl.when(k == pl.num_programs(3) - 1)
    def _finalize():
        o_ref[...] = (acc_ref[...] + b_ref[...].astype(jnp.float32)).astype(o_ref.dtype)


# --------------------------------- tiled wrapper ---------------------------------

def _shrink_tiles(tm, tn, tk_padded, itemsize, m_align, with_acc):
    """Shrink (tm, tn) so the double-buffered working set fits the VMEM budget."""
    def est(tm_, tn_):
        db = 2 * (tm_ * tk_padded + tk_padded * tn_ + tn_ + tm_ * tn_) * itemsize
        return db + (tm_ * tn_ * 4 if with_acc else 0)

    while est(tm, tn) > _VMEM_TILE_BUDGET:
        if tn > _LANE and tn >= tm:
            tn = max(_LANE, ((tn // 2) // _LANE) * _LANE)
        elif tm > m_align:
            tm = max(m_align, ((tm // 2) // m_align) * m_align)
        elif tn > _LANE:
            tn = max(_LANE, ((tn // 2) // _LANE) * _LANE)
        else:
            break
    return tm, tn


def _ensemble_linear_tiled(x, weight, bias, *, block_m, block_n, block_k, compute_dtype):
    E, B, K = x.shape
    N = weight.shape[2]
    itemsize = x.dtype.itemsize

    # Tile granularity: sublane multiple of 8 (16 for bf16 sublane packing),
    # lane multiple of 128.  Tiles are capped at the 8/128-rounded problem dims
    # (NOT at tile-size-rounded dims) so padding work stays minimal.
    m_align = 16 if jnp.dtype(compute_dtype or x.dtype) == jnp.bfloat16 else 8
    tm = min(block_m, _round_up(B, m_align))
    tn = min(block_n, _round_up(N, _LANE))

    single_k = _round_up(K, _LANE) <= block_k
    out_shape = jax.ShapeDtypeStruct((E, B, N), x.dtype)   # true shape: no post-slice
    out_bytes = E * B * N * itemsize
    flops = 2 * E * B * K * N

    if single_k:
        # Whole reduction in one tile: block K dim == full array dim, so no HBM
        # K-padding (and no copies of x / weight) is needed.
        tm, tn = _shrink_tiles(tm, tn, _round_up(K, _LANE), itemsize, m_align,
                               with_acc=False)
        grid_m = pl.cdiv(B, tm)
        grid_n = pl.cdiv(N, tn)

        # v7x megacore: keep >= 2 parallel programs so the 2nd TC isn't idle.
        if E * grid_m * grid_n < 2 and tm > m_align:
            tm = max(m_align, _round_up((B + 1) // 2, m_align))
            grid_m = pl.cdiv(B, tm)

        # Pick the grid order that keeps the larger operand's block index
        # invariant over the innermost axis (Pallas then skips its re-DMA).
        w_resident_bytes = x.nbytes * grid_n + weight.nbytes
        x_resident_bytes = x.nbytes + weight.nbytes * grid_m
        if w_resident_bytes <= x_resident_bytes:
            grid = (E, grid_n, grid_m)          # m innermost: weight/bias resident
            x_spec = pl.BlockSpec((pl.Squeezed(), tm, K), lambda e, n, m: (e, m, 0))
            w_spec = pl.BlockSpec((pl.Squeezed(), K, tn), lambda e, n, m: (e, 0, n))
            b_spec = pl.BlockSpec((pl.Squeezed(), 1, tn), lambda e, n, m: (e, 0, n))
            o_spec = pl.BlockSpec((pl.Squeezed(), tm, tn), lambda e, n, m: (e, m, n))
            streamed = w_resident_bytes
        else:
            grid = (E, grid_m, grid_n)          # n innermost: x resident
            x_spec = pl.BlockSpec((pl.Squeezed(), tm, K), lambda e, m, n: (e, m, 0))
            w_spec = pl.BlockSpec((pl.Squeezed(), K, tn), lambda e, m, n: (e, 0, n))
            b_spec = pl.BlockSpec((pl.Squeezed(), 1, tn), lambda e, m, n: (e, 0, n))
            o_spec = pl.BlockSpec((pl.Squeezed(), tm, tn), lambda e, m, n: (e, m, n))
            streamed = x_resident_bytes

        cost = pl.CostEstimate(flops=flops, transcendentals=0,
                               bytes_accessed=streamed + bias.nbytes + out_bytes)
        return pl.pallas_call(
            functools.partial(_ensemble_linear_onek_kernel, compute_dtype=compute_dtype),
            out_shape=out_shape,
            grid_spec=pltpu.PrefetchScalarGridSpec(
                num_scalar_prefetch=0,
                grid=grid,
                in_specs=[x_spec, w_spec, b_spec],
                out_specs=o_spec,
            ),
            compiler_params=pltpu.CompilerParams(
                dimension_semantics=("parallel", "parallel", "parallel"),
                vmem_limit_bytes=_VMEM_LIMIT_BYTES),
            cost_estimate=cost,
        )(x, weight, bias)

    # ---- Large-K fallback: reduction axis innermost with an f32 accumulator ----
    tk = block_k
    Kp = _round_up(K, tk)
    # Zero-pad K only: garbage in a partial K tile would contaminate the reduction.
    if Kp != K:
        x = jnp.pad(x, ((0, 0), (0, 0), (0, Kp - K)))
        weight = jnp.pad(weight, ((0, 0), (0, Kp - K), (0, 0)))

    tm, tn = _shrink_tiles(tm, tn, tk, itemsize, m_align, with_acc=True)
    grid_m = pl.cdiv(B, tm)
    grid_n = pl.cdiv(N, tn)
    if E * grid_m * grid_n < 2 and tm > m_align:   # v7x megacore
        tm = max(m_align, _round_up((B + 1) // 2, m_align))
        grid_m = pl.cdiv(B, tm)

    grid = (E, grid_m, grid_n, Kp // tk)
    cost = pl.CostEstimate(
        flops=flops, transcendentals=0,
        bytes_accessed=(x.nbytes * grid_n + weight.nbytes * grid_m
                        + bias.nbytes + out_bytes))
    return pl.pallas_call(
        functools.partial(_ensemble_linear_kacc_kernel, compute_dtype=compute_dtype),
        out_shape=out_shape,
        grid_spec=pltpu.PrefetchScalarGridSpec(
            num_scalar_prefetch=0,
            grid=grid,
            in_specs=[
                pl.BlockSpec((pl.Squeezed(), tm, tk), lambda e, m, n, k: (e, m, k)),
                pl.BlockSpec((pl.Squeezed(), tk, tn), lambda e, m, n, k: (e, k, n)),
                pl.BlockSpec((pl.Squeezed(), 1, tn), lambda e, m, n, k: (e, 0, n)),
            ],
            out_specs=pl.BlockSpec((pl.Squeezed(), tm, tn),
                                   lambda e, m, n, k: (e, m, n)),
            scratch_shapes=[pltpu.VMEM((tm, tn), jnp.float32)],
        ),
        compiler_params=pltpu.CompilerParams(
            dimension_semantics=("parallel", "parallel", "parallel", "arbitrary"),
            vmem_limit_bytes=_VMEM_LIMIT_BYTES),
        cost_estimate=cost,
    )(x, weight, bias)


# --------------------------------- public wrapper ---------------------------------

def ensemble_linear(x, weight, bias, *, block_m=512, block_n=512, block_k=1024,
                    compute_dtype=None):
    """EnsembleLinearLayer forward: x.matmul(weight) + bias.

    x: (E, B, K), weight: (E, K, N), bias: (E, 1, N) -> (E, B, N).
    compute_dtype=jnp.bfloat16 enables the fast MXU path (f32 accumulation kept).
    """
    E, B, K = x.shape
    assert weight.shape[0] == E and weight.shape[1] == K
    N = weight.shape[2]
    assert bias.shape == (E, 1, N)

    # Small-path check uses lane-PADDED sizes so the real VMEM footprint is bounded.
    itemsize = x.dtype.itemsize
    Np = _round_up(N, _LANE)
    padded_bytes = (x.nbytes + E * K * Np * itemsize + E * Np * itemsize
                    + E * B * Np * itemsize)
    if padded_bytes <= _SMALL_LIMIT_BYTES:
        return _ensemble_linear_small(x, weight, bias, compute_dtype)
    return _ensemble_linear_tiled(
        x, weight, bias, block_m=block_m, block_n=block_n, block_k=block_k,
        compute_dtype=compute_dtype)


if __name__ == "__main__":
    key = jax.random.PRNGKey(0)

    def make_case(k, E, B, K, N):
        k_w, k_b, k_x = jax.random.split(k, 3)
        bound = 1.0 / (K ** 0.5)
        w = jax.random.uniform(k_w, (E, K, N), jnp.float32, -bound, bound)
        b = jax.random.uniform(k_b, (E, 1, N), jnp.float32, -bound, bound)
        x = jax.random.normal(k_x, (E, B, K), jnp.float32)
        return x, w, b

    k1, k2, k3 = jax.random.split(key, 3)

    # 1. Small config matching the module's toy hyperparameters (small path).
    x1, w1, b1 = make_case(k1, E=4, B=8, K=32, N=16)
    out1 = jax.block_until_ready(ensemble_linear(x1, w1, b1))
    ref1 = jnp.matmul(x1, w1) + b1
    assert out1.shape == ref1.shape
    assert jnp.allclose(out1, ref1, atol=1e-4, rtol=1e-4)

    # 2. Non-tile-aligned shape exercising the single-K tiled path (no K grid axis,
    #    operand-resident grid order, masked edge blocks for B=1000 / N=320).
    x2, w2, b2 = make_case(k2, E=3, B=1000, K=512, N=320)
    out2 = jax.block_until_ready(ensemble_linear(x2, w2, b2))
    ref2 = jnp.matmul(x2, w2) + b2
    assert out2.shape == ref2.shape
    assert jnp.allclose(out2, ref2, atol=2e-3, rtol=2e-3)

    # 3. Large-K shape exercising the K-accumulation path (K zero-padded to tile).
    x3, w3, b3 = make_case(k3, E=2, B=512, K=1536, N=384)
    out3 = jax.block_until_ready(ensemble_linear(x3, w3, b3))
    ref3 = jnp.matmul(x3, w3) + b3
    assert out3.shape == ref3.shape
    assert jnp.allclose(out3, ref3, atol=2e-3, rtol=2e-3)

    print("KERNEL_OK")
</pallas_src>

<mosaic_0001>
module attributes {stable_mosaic.version = 11 : i64} {
  func.func @_ensemble_linear_small_kernel(%arg0: memref<4x8x32xf32, #tpu.memory_space<vmem>>, %arg1: memref<4x32x128xf32, #tpu.memory_space<vmem>>, %arg2: memref<4x1x128xf32, #tpu.memory_space<vmem>>, %arg3: memref<4x8x128xf32, #tpu.memory_space<vmem>>) attributes {dimension_semantics = [], scalar_prefetch = 0 : i64, scratch_operands = 0 : i64, tpu.core_type = #tpu.core_type<tc>} {
    %c0 = arith.constant 0 : index
    %c0_0 = arith.constant 0 : index
    %c0_1 = arith.constant 0 : index
    %0 = vector.load %arg0[%c0, %c0_0, %c0_1] : memref<4x8x32xf32, #tpu.memory_space<vmem>>, vector<4x8x32xf32>
    %c0_2 = arith.constant 0 : index
    %c0_3 = arith.constant 0 : index
    %c0_4 = arith.constant 0 : index
    %1 = vector.load %arg1[%c0_2, %c0_3, %c0_4] : memref<4x32x128xf32, #tpu.memory_space<vmem>>, vector<4x32x128xf32>
    "tpu.trace_start"() <{level = 10 : i32, message = "ebk,ekn->ebn"}> : () -> ()
    %cst = arith.constant dense<0.000000e+00> : vector<4x8x128xf32>
    %2 = tpu.matmul %0, %1, %cst {dimension_numbers = #tpu.dot_dimension_numbers<[2], [1], [1], [2], [0, 0, 0, 1, 1, 2], [0], [0]>} : vector<4x8x32xf32>, vector<4x32x128xf32>, vector<4x8x128xf32> -> vector<4x8x128xf32>
    "tpu.trace_stop"() : () -> ()
    %c0_5 = arith.constant 0 : index
    %c0_6 = arith.constant 0 : index
    %c0_7 = arith.constant 0 : index
    %3 = vector.load %arg2[%c0_5, %c0_6, %c0_7] : memref<4x1x128xf32, #tpu.memory_space<vmem>>, vector<4x1x128xf32>
    %4 = vector.broadcast %3 : vector<4x1x128xf32> to vector<4x8x128xf32>
    %5 = arith.addf %2, %4 : vector<4x8x128xf32>
    %c0_8 = arith.constant 0 : index
    %c0_9 = arith.constant 0 : index
    %c0_10 = arith.constant 0 : index
    %6 = vector.load %arg3[%c0_8, %c0_9, %c0_10] : memref<4x8x128xf32, #tpu.memory_space<vmem>>, vector<4x8x128xf32>
    tpu.vector_store %arg3[%c0_8, %c0_9, %c0_10], %5 {strides = array<i32>} : memref<4x8x128xf32, #tpu.memory_space<vmem>>, vector<4x8x128xf32>,
    return
  }
}

</mosaic_0001>

<llo_original>
// kernel: tpu_custom_call.1
$region0: #{tpu_custom_call.1}
  #allocation0 [shape = 'u32[]', space=smem, size = 0x4, offset = 0x4, fixed_abs, tag = 'smem constant byte address 0x4 - core index']
  #allocation1 [shape = 'u32[72,128]{1,0:T(1,128)}', space=vmem, size = 0x9000, scoped, tag = 'internal scratch']
  %s0 = inlined_call_operand.hbm [shape: f32[4,8,32], index: 0, kind: input, shape index: {}]
  %s1 = inlined_call_operand.hbm [shape: f32[4,32,128], index: 1, kind: input, shape index: {}]
  %s2 = inlined_call_operand.hbm [shape: f32[4,1,128], index: 2, kind: input, shape index: {}]
  %s3 = inlined_call_operand.hbm [shape: f32[4,8,128], index: 3, kind: output, shape index: {}]
  %s4 = sld [smem:[#allocation0]]
  $region34: #{tpu_custom_call.1} parent=0
    _
  %s6 = ssub.s32 1, %s4
  %s7 = scalar_select 0, %s6, %s4
  $region1: #{tpu_custom_call.1} parent=0
    #allocation2 [shape = 'u8[16384]{0}', space=vmem, size = 0x4000, scoped, tag = 'input window, operand 0, single buffered']
    #allocation3 [shape = 's32[1]{0}', space=sflag, size = 0x4, scoped, tag = 'scoped memory for tpu_custom_call.1']
    #allocation4 [shape = 's32[1]{0}', space=sflag, size = 0x4, scoped, tag = 'scoped memory for tpu_custom_call.1']
    #allocation5 [shape = 'u8[65536]{0}', space=vmem, size = 0x10000, scoped, tag = 'input window, operand 1, single buffered']
    #allocation6 [shape = 's32[1]{0}', space=sflag, size = 0x4, scoped, tag = 'scoped memory for tpu_custom_call.1']
    #allocation7 [shape = 'u8[2048]{0}', space=vmem, size = 0x800, scoped, tag = 'input window, operand 2, single buffered']
    #allocation8 [shape = 'u8[16384]{0}', space=vmem, size = 0x4000, scoped, tag = 'output window, operand 0, single buffered']
    %8 = vsyncpa [#allocation3], 0
    %9 = vsyncpa [#allocation6], 0
    %10 = vsyncpa [#allocation4], 0
    // Predicated region
    $region2: #{tpu_custom_call.1} parent=1 // pred_check
      _
    $region3: #{tpu_custom_call.1} parent=1 // pred_check_branch
      %12 = sbr.rel (0) target = $region5
    $region4: #{tpu_custom_call.1} parent=1 // pred_region
      %14 = vsyncadd [#allocation3], 0
      %s15 = sshll.u32 %s0, 4
      %s16 = int_to_ptr.hbm [resolvable:$true] %s15
      %s17 = sshll.u32 [#allocation2], 4
      %s18 = int_to_ptr.vmem [resolvable:$true] %s17
      %23 = dma.hbm_to_vmem [thread:$0]  %s16, 512, %s18, [#allocation3], 128, 128, 8
    $region5: #{tpu_custom_call.1} parent=1 // pred_fallthru
      _
    // Predicated region
    $region6: #{tpu_custom_call.1} parent=1 // pred_check
      _
    $region7: #{tpu_custom_call.1} parent=1 // pred_check_branch
      %25 = sbr.rel (0) target = $region9
    $region8: #{tpu_custom_call.1} parent=1 // pred_region
      %27 = vsyncadd [#allocation6], 0
      %s28 = sshll.u32 %s1, 4
      %s29 = int_to_ptr.hbm [resolvable:$true] %s28
      %s30 = sshll.u32 [#allocation5], 4
      %s31 = int_to_ptr.vmem [resolvable:$true] %s30
      %36 = dma.hbm_to_vmem [thread:$0]  %s29, 2048, %s31, [#allocation6], 128, 128, 8
    $region9: #{tpu_custom_call.1} parent=1 // pred_fallthru
      _
    // Predicated region
    $region10: #{tpu_custom_call.1} parent=1 // pred_check
      _
    $region11: #{tpu_custom_call.1} parent=1 // pred_check_branch
      %38 = sbr.rel (0) target = $region13
    $region12: #{tpu_custom_call.1} parent=1 // pred_region
      %40 = vsyncadd [#allocation6], 0
      %s41 = sshll.u32 %s2, 4
      %s42 = int_to_ptr.hbm [resolvable:$true] %s41
      %s43 = sshll.u32 [#allocation7], 4
      %s44 = int_to_ptr.vmem [resolvable:$true] %s43
      %49 = dma.hbm_to_vmem [thread:$0]  %s42, 64, %s44, [#allocation6], 16, 16, 1
    $region13: #{tpu_custom_call.1} parent=1 // pred_fallthru
      _
    // Predicated region
    $region14: #{tpu_custom_call.1} parent=1 // pred_check
      _
    $region15: #{tpu_custom_call.1} parent=1 // pred_check_branch
      %51 = sbr.rel (0) target = $region17
    $region16: #{tpu_custom_call.1} parent=1 // pred_region
      %53 = dma.done [#allocation3], 512
    $region17: #{tpu_custom_call.1} parent=1 // pred_fallthru
      _
    // Predicated region
    $region18: #{tpu_custom_call.1} parent=1 // pred_check
      _
    $region19: #{tpu_custom_call.1} parent=1 // pred_check_branch
      %55 = sbr.rel (0) target = $region21
    $region20: #{tpu_custom_call.1} parent=1 // pred_region
      %57 = dma.done [#allocation6], 2048
    $region21: #{tpu_custom_call.1} parent=1 // pred_fallthru
      _
    // Predicated region
    $region22: #{tpu_custom_call.1} parent=1 // pred_check
      _
    $region23: #{tpu_custom_call.1} parent=1 // pred_check_branch
      %59 = sbr.rel (0) target = $region25
    $region24: #{tpu_custom_call.1} parent=1 // pred_region
      %61 = dma.done [#allocation6], 64
    $region25: #{tpu_custom_call.1} parent=1 // pred_fallthru
      _
    %v62 = vld [vmem:[#allocation2] sm:$0xff]
    %v63 = vld [vmem:[#allocation2 + $0x8] sm:$0xff]
    %v64 = vld [vmem:[#allocation2 + $0x10] sm:$0xff]
    %v65 = vld [vmem:[#allocation2 + $0x18] sm:$0xff]
    %v66 = vld [vmem:[#allocation5] sm:$0xff]
    %v67 = vld [vmem:[#allocation5 + $0x8] sm:$0xff]
    %v68 = vld [vmem:[#allocation5 + $0x10] sm:$0xff]
    %v69 = vld [vmem:[#allocation5 + $0x18] sm:$0xff]
    %v70 = vld [vmem:[#allocation5 + $0x20] sm:$0xff]
    %v71 = vld [vmem:[#allocation5 + $0x28] sm:$0xff]
    %v72 = vld [vmem:[#allocation5 + $0x30] sm:$0xff]
    %v73 = vld [vmem:[#allocation5 + $0x38] sm:$0xff]
    %v74 = vld [vmem:[#allocation5 + $0x40] sm:$0xff]
    %v75 = vld [vmem:[#allocation5 + $0x48] sm:$0xff]
    %v76 = vld [vmem:[#allocation5 + $0x50] sm:$0xff]
    %v77 = vld [vmem:[#allocation5 + $0x58] sm:$0xff]
    %v78 = vld [vmem:[#allocation5 + $0x60] sm:$0xff]
    %v79 = vld [vmem:[#allocation5 + $0x68] sm:$0xff]
    %v80 = vld [vmem:[#allocation5 + $0x70] sm:$0xff]
    %v81 = vld [vmem:[#allocation5 + $0x78] sm:$0xff]
    %v82 = vld [vmem:[#allocation7] sm:$0x1]
    %v83 = vld [vmem:[#allocation7 + $0x1] sm:$0x1]
    %v84 = vld [vmem:[#allocation7 + $0x2] sm:$0x1]
    %v85 = vld [vmem:[#allocation7 + $0x3] sm:$0x1]
    %v90 = vperm.slane %v82, 0
    %v91 = vperm.slane %v83, 0
    %v92 = vperm.slane %v84, 0
    %v93 = vperm.slane %v85, 0
    %vm98 = vcmask 261120
    %v100 = vsel %vm98, %v62, 0
    %102 = vmatpush.msra.mxu0 0.0
    %103 = vmatpush.msra.mxu0 0.0
    %104 = vmatpush.msra.mxu0 0.0
    %105 = vmatpush.msra.mxu0 0.0
    %106 = vmatpush.msra.mxu0 0.0
    %107 = vmatpush.msra.mxu0 0.0
    %108 = vmatpush.msra.mxu0 0.0
    %109 = vmatpush.msra.mxu0 0.0
    %110 = vmatpush.msra.mxu0 0.0
    %111 = vmatpush.msra.mxu0 0.0
    %112 = vmatpush.msra.mxu0 0.0
    %113 = vmatpush.msra.mxu0 0.0
    %114 = vmatpush.msra.mxu0 %v69
    %115 = vmatpush.msra.mxu0 %v68
    %116 = vmatpush.msra.mxu0 %v67
    %117 = vmatpush.msra.mxu0 %v66
    %118 = vmatmul.f32.gmra.mxu0 %v100
    %v119 = vpop.f32.mrf.mxu0
    %v120 = vadd.f32 %v90, %v119
    %121 = vdwg.mxu0
    %v123 = vsel %vm98, %v63, 0
    %125 = vmatpush.msra.mxu0 0.0
    %126 = vmatpush.msra.mxu0 0.0
    %127 = vmatpush.msra.mxu0 0.0
    %128 = vmatpush.msra.mxu0 0.0
    %129 = vmatpush.msra.mxu0 0.0
    %130 = vmatpush.msra.mxu0 0.0
    %131 = vmatpush.msra.mxu0 0.0
    %132 = vmatpush.msra.mxu0 0.0
    %133 = vmatpush.msra.mxu0 0.0
    %134 = vmatpush.msra.mxu0 0.0
    %135 = vmatpush.msra.mxu0 0.0
    %136 = vmatpush.msra.mxu0 0.0
    %137 = vmatpush.msra.mxu0 %v73
    %138 = vmatpush.msra.mxu0 %v72
    %139 = vmatpush.msra.mxu0 %v71
    %140 = vmatpush.msra.mxu0 %v70
    %141 = vmatmul.f32.gmra.mxu0 %v123
    %v142 = vpop.f32.mrf.mxu0
    %v143 = vadd.f32 %v91, %v142
    %144 = vdwg.mxu0
    %v146 = vsel %vm98, %v64, 0
    %148 = vmatpush.msra.mxu0 0.0
    %149 = vmatpush.msra.mxu0 0.0
    %150 = vmatpush.msra.mxu0 0.0
    %151 = vmatpush.msra.mxu0 0.0
    %152 = vmatpush.msra.mxu0 0.0
    %153 = vmatpush.msra.mxu0 0.0
    %154 = vmatpush.msra.mxu0 0.0
    %155 = vmatpush.msra.mxu0 0.0
    %156 = vmatpush.msra.mxu0 0.0
    %157 = vmatpush.msra.mxu0 0.0
    %158 = vmatpush.msra.mxu0 0.0
    %159 = vmatpush.msra.mxu0 0.0
    %160 = vmatpush.msra.mxu0 %v77
    %161 = vmatpush.msra.mxu0 %v76
    %162 = vmatpush.msra.mxu0 %v75
    %163 = vmatpush.msra.mxu0 %v74
    %164 = vmatmul.f32.gmra.mxu0 %v146
    %v165 = vpop.f32.mrf.mxu0
    %v166 = vadd.f32 %v92, %v165
    %167 = vdwg.mxu0
    %v169 = vsel %vm98, %v65, 0
    %171 = vmatpush.msra.mxu0 0.0
    %172 = vmatpush.msra.mxu0 0.0
    %173 = vmatpush.msra.mxu0 0.0
    %174 = vmatpush.msra.mxu0 0.0
    %175 = vmatpush.msra.mxu0 0.0
    %176 = vmatpush.msra.mxu0 0.0
    %177 = vmatpush.msra.mxu0 0.0
    %178 = vmatpush.msra.mxu0 0.0
    %179 = vmatpush.msra.mxu0 0.0
    %180 = vmatpush.msra.mxu0 0.0
    %181 = vmatpush.msra.mxu0 0.0
    %182 = vmatpush.msra.mxu0 0.0
    %183 = vmatpush.msra.mxu0 %v81
    %184 = vmatpush.msra.mxu0 %v80
    %185 = vmatpush.msra.mxu0 %v79
    %186 = vmatpush.msra.mxu0 %v78
    %187 = vmatmul.f32.gmra.mxu0 %v169
    %v188 = vpop.f32.mrf.mxu0
    %v189 = vadd.f32 %v93, %v188
    %190 = vdwg.mxu0
    %191 = vst [vmem:[#allocation8] sm:$0xff] %v120
    %192 = vst [vmem:[#allocation8 + $0x8] sm:$0xff] %v143
    %193 = vst [vmem:[#allocation8 + $0x10] sm:$0xff] %v166
    %194 = vst [vmem:[#allocation8 + $0x18] sm:$0xff] %v189
    // Predicated region
    $region26: #{tpu_custom_call.1} parent=1 // pred_check
      _
    $region27: #{tpu_custom_call.1} parent=1 // pred_check_branch
      %196 = sbr.rel (0) target = $region29
    $region28: #{tpu_custom_call.1} parent=1 // pred_region
      %198 = vsyncadd [#allocation4], 0
      %s199 = sshll.u32 [#allocation8], 4
      %s200 = int_to_ptr.vmem [resolvable:$true] %s199
      %s201 = sshll.u32 %s3, 4
      %s202 = int_to_ptr.hbm [resolvable:$true] %s201
      %207 = dma.vmem_to_hbm [thread:$0]  %s200, 512, %s202, [#allocation4], 128, 128, 8
    $region29: #{tpu_custom_call.1} parent=1 // pred_fallthru
      _
    // Predicated region
    $region30: #{tpu_custom_call.1} parent=1 // pred_check
      _
    $region31: #{tpu_custom_call.1} parent=1 // pred_check_branch
      %209 = sbr.rel (0) target = $region33
    $region32: #{tpu_custom_call.1} parent=1 // pred_region
      %211 = dma.done [#allocation4], 512
    $region33: #{tpu_custom_call.1} parent=1 // pred_fallthru
      _
    %212 = vsyncpa [#allocation3], 1
    %213 = vsyncpa [#allocation6], 1
    %214 = vsyncpa [#allocation4], 1

</llo_original>
